<compile_context>
chip_gen: v7x
topology: tpu7x:2x2x1
jax: 0.10.0
libtpu: 0.0.40
codegen_flags: <defaults>
</compile_context>

<pallas_src>
import jax
import jax.numpy as jnp
from jax.experimental import pallas as pl
from jax.experimental.pallas import tpu as pltpu

_LANE = 128  # TPU lane width


def _cdiv(a, b):
    return (a + b - 1) // b


def _round_up(n, m):
    return ((n + m - 1) // m) * m


def _mlp_kernel(x_ref, w1_ref, b1_ref, w2_ref, b2_ref, w3_ref, b3_ref, o_ref):
    # Hoist bias loads so the vlds overlap the first matmul.
    b1 = b1_ref[...]
    b2 = b2_ref[...]
    b3 = b3_ref[...]

    # fc1 + relu
    h1 = jnp.dot(x_ref[...], w1_ref[...], preferred_element_type=jnp.float32)
    h1 = jnp.maximum(h1 + b1, 0.0)
    # fc2 + relu
    h2 = jnp.dot(h1, w2_ref[...], preferred_element_type=jnp.float32)
    h2 = jnp.maximum(h2 + b2, 0.0)
    # out (no activation); output slab is lane-dense (padded to 128 columns)
    o = jnp.dot(h2, w3_ref[...], preferred_element_type=jnp.float32)
    o_ref[...] = (o + b3).astype(o_ref.dtype)


def prepare_params(params):
    """One-time (outside the DQN hot loop): pad the last layer to a lane-dense
    128-column output so the kernel issues full-width stores."""
    if "w3p" in params:
        return params
    w3, b3 = params["w3"], params["b3"]
    n_actions = w3.shape[1]
    n_out_pad = _round_up(max(n_actions, _LANE), _LANE)
    pp = dict(params)
    pp["w3p"] = jnp.pad(w3, ((0, 0), (0, n_out_pad - n_actions)))
    pp["b3p"] = jnp.pad(b3, ((0, 0), (0, n_out_pad - n_actions)))
    pp["n_actions"] = n_actions
    return pp


def _choose_batch_tiling(B, tb_max):
    """Balanced tiling: pick the tile count first, then a balanced tile size.

    - ntiles = cdiv(B, tb_max), but at least 2 (and even) once B >= 16 so v7x
      megacore can split the batch axis across both TensorCores; the extra
      grid step this adds on single-TC v5e/v6e is ~0.35 us, i.e. harmless.
    - tb is a multiple of 8 (f32 sublane) and b_pad = ntiles * tb >= B, which
      avoids the old pathological padding (e.g. 300 -> 512).
    """
    ntiles = max(1, _cdiv(B, tb_max))
    if B >= 16:
        ntiles = _round_up(max(ntiles, 2), 2)
    tb = _round_up(_cdiv(B, ntiles), 8)
    return tb, ntiles * tb


def net_forward(x, params, *, tb_max=1024):
    """x: (B, n_states) float32; params from init_params (optionally already
    run through prepare_params)."""
    params = prepare_params(params)
    w1, b1 = params["w1"], params["b1"]
    w2, b2 = params["w2"], params["b2"]
    w3p, b3p = params["w3p"], params["b3p"]
    n_actions = params["n_actions"]

    B, n_states = x.shape
    n_hidden = w1.shape[1]
    n_hidden2 = w2.shape[1]
    n_out_pad = w3p.shape[1]

    # ---- balanced batch tiling (only the x pad stays in the hot path) ----
    tb, b_pad = _choose_batch_tiling(B, tb_max)
    xp = x if b_pad == B else jnp.pad(x, ((0, b_pad - B), (0, 0)))
    grid = (b_pad // tb,)

    # Weights/biases are VMEM-resident: constant index_map -> fetched once.
    resident = lambda shape: pl.BlockSpec(shape, lambda i: (0, 0))

    # Advisory only (over-states useful work by the padding; harmless).
    flops = 2 * b_pad * (n_states * n_hidden + n_hidden * n_hidden2
                         + n_hidden2 * n_out_pad)
    bytes_accessed = 4 * (b_pad * n_states + b_pad * n_out_pad
                          + n_states * n_hidden + n_hidden
                          + n_hidden * n_hidden2 + n_hidden2
                          + n_hidden2 * n_out_pad + n_out_pad)

    out = pl.pallas_call(
        _mlp_kernel,
        out_shape=jax.ShapeDtypeStruct((b_pad, n_out_pad), jnp.float32),
        grid=grid,
        in_specs=[
            pl.BlockSpec((tb, n_states), lambda i: (i, 0)),  # x tile (pipelined)
            resident(w1.shape), resident(b1.shape),          # weights stay resident
            resident(w2.shape), resident(b2.shape),
            resident(w3p.shape), resident(b3p.shape),
        ],
        out_specs=pl.BlockSpec((tb, n_out_pad), lambda i: (i, 0)),
        compiler_params=pltpu.CompilerParams(
            dimension_semantics=("parallel",),   # v7x: split batch across 2 TCs
            vmem_limit_bytes=32 << 20,           # headroom for large tb, v7x-safe
        ),
        cost_estimate=pl.CostEstimate(
            flops=flops, transcendentals=0, bytes_accessed=bytes_accessed),
    )(xp, w1, b1, w2, b2, w3p, b3p)

    # strip batch padding and lane padding
    return out[:B, :n_actions]


def init_params(key, n_states, n_actions, n_hidden):
    """Deterministic init; weights stored as (in, out) == PyTorch W.T."""
    ks = jax.random.split(key, 6)

    def layer(kw, kb, fan_in, fan_out):
        # PyTorch Linear default init: U(-1/sqrt(fan_in), 1/sqrt(fan_in))
        bound = 1.0 / jnp.sqrt(fan_in)
        w = jax.random.uniform(kw, (fan_in, fan_out), jnp.float32, -bound, bound)
        b = jax.random.uniform(kb, (1, fan_out), jnp.float32, -bound, bound)
        return w, b

    w1, b1 = layer(ks[0], ks[1], n_states, n_hidden)
    w2, b2 = layer(ks[2], ks[3], n_hidden, n_hidden * 2)
    w3, b3 = layer(ks[4], ks[5], n_hidden * 2, n_actions)
    return {"w1": w1, "b1": b1, "w2": w2, "b2": b2, "w3": w3, "b3": b3}


def net_forward_ref(x, p):
    h1 = jnp.maximum(x @ p["w1"] + p["b1"], 0.0)
    h2 = jnp.maximum(h1 @ p["w2"] + p["b2"], 0.0)
    return h2 @ p["w3"] + p["b3"]


if __name__ == "__main__":
    # Small shapes consistent with a DQN Net: batch=2, n_states=4,
    # n_hidden=32 (fc2 width 64), n_actions=2.
    B, n_states, n_hidden, n_actions = 2, 4, 32, 2

    key = jax.random.PRNGKey(0)
    k_x, k_p = jax.random.split(key)
    x = jax.random.normal(k_x, (B, n_states), dtype=jnp.float32)
    params = init_params(k_p, n_states, n_actions, n_hidden)
    # Pad/prepare weights once, outside the per-step forward (DQN hot loop).
    prepared = prepare_params(params)

    out = net_forward(x, prepared)
    out = jax.block_until_ready(out)

    ref = net_forward_ref(x, params)
    assert out.shape == (B, n_actions)
    assert jnp.allclose(out, ref, atol=1e-5, rtol=1e-5)

    # Larger, tile-misaligned batch: exercises balanced tiling (300 -> 2 tiles
    # of 152 rows = 304 padded rows) and the >=2-grid-step megacore path.
    xb = jax.random.normal(jax.random.PRNGKey(1), (300, n_states), dtype=jnp.float32)
    outb = jax.block_until_ready(net_forward(xb, prepared))
    refb = net_forward_ref(xb, params)
    assert outb.shape == (300, n_actions)
    assert jnp.allclose(outb, refb, atol=1e-5, rtol=1e-5)

    print("KERNEL_OK")
</pallas_src>

<mosaic_0001>
module attributes {stable_mosaic.version = 11 : i64} {
  func.func @_mlp_kernel(%arg0: i32, %arg1: memref<8x4xf32, #tpu.memory_space<vmem>>, %arg2: memref<4x32xf32, #tpu.memory_space<vmem>>, %arg3: memref<1x32xf32, #tpu.memory_space<vmem>>, %arg4: memref<32x64xf32, #tpu.memory_space<vmem>>, %arg5: memref<1x64xf32, #tpu.memory_space<vmem>>, %arg6: memref<64x128xf32, #tpu.memory_space<vmem>>, %arg7: memref<1x128xf32, #tpu.memory_space<vmem>>, %arg8: memref<8x128xf32, #tpu.memory_space<vmem>>) attributes {dimension_semantics = [#tpu.dimension_semantics<parallel>], iteration_bounds = array<i64: 1>, scalar_prefetch = 0 : i64, scratch_operands = 0 : i64, tpu.core_type = #tpu.core_type<tc>, window_params = [{transform_indices = @transform_0, window_bounds = array<i64: 8, 4>}, {pipeline_mode = #tpu.pipeline_mode<synchronous>, transform_indices = @transform_1, window_bounds = array<i64: 4, 32>}, {pipeline_mode = #tpu.pipeline_mode<synchronous>, transform_indices = @transform_2, window_bounds = array<i64: 1, 32>}, {pipeline_mode = #tpu.pipeline_mode<synchronous>, transform_indices = @transform_3, window_bounds = array<i64: 32, 64>}, {pipeline_mode = #tpu.pipeline_mode<synchronous>, transform_indices = @transform_4, window_bounds = array<i64: 1, 64>}, {pipeline_mode = #tpu.pipeline_mode<synchronous>, transform_indices = @transform_5, window_bounds = array<i64: 64, 128>}, {pipeline_mode = #tpu.pipeline_mode<synchronous>, transform_indices = @transform_6, window_bounds = array<i64: 1, 128>}, {transform_indices = @transform_7, window_bounds = array<i64: 8, 128>}]} {
    %c0 = arith.constant 0 : index
    %c0_0 = arith.constant 0 : index
    %0 = vector.load %arg3[%c0, %c0_0] : memref<1x32xf32, #tpu.memory_space<vmem>>, vector<1x32xf32>
    %c0_1 = arith.constant 0 : index
    %c0_2 = arith.constant 0 : index
    %1 = vector.load %arg5[%c0_1, %c0_2] : memref<1x64xf32, #tpu.memory_space<vmem>>, vector<1x64xf32>
    %c0_3 = arith.constant 0 : index
    %c0_4 = arith.constant 0 : index
    %2 = vector.load %arg7[%c0_3, %c0_4] : memref<1x128xf32, #tpu.memory_space<vmem>>, vector<1x128xf32>
    %c0_5 = arith.constant 0 : index
    %c0_6 = arith.constant 0 : index
    %3 = vector.load %arg1[%c0_5, %c0_6] : memref<8x4xf32, #tpu.memory_space<vmem>>, vector<8x4xf32>
    %c0_7 = arith.constant 0 : index
    %c0_8 = arith.constant 0 : index
    %4 = vector.load %arg2[%c0_7, %c0_8] : memref<4x32xf32, #tpu.memory_space<vmem>>, vector<4x32xf32>
    %cst = arith.constant dense<0.000000e+00> : vector<8x32xf32>
    %5 = tpu.matmul %3, %4, %cst {dimension_numbers = #tpu.dot_dimension_numbers<[1], [0], [0], [1], [0, 0, 1, 1], [], []>} : vector<8x4xf32>, vector<4x32xf32>, vector<8x32xf32> -> vector<8x32xf32>
    %6 = vector.broadcast %0 : vector<1x32xf32> to vector<8x32xf32>
    %7 = arith.addf %5, %6 : vector<8x32xf32>
    %cst_9 = arith.constant 0.000000e+00 : f32
    %8 = vector.broadcast %cst_9 : f32 to vector<8x32xf32>
    %9 = arith.maximumf %7, %8 : vector<8x32xf32>
    %c0_10 = arith.constant 0 : index
    %c0_11 = arith.constant 0 : index
    %10 = vector.load %arg4[%c0_10, %c0_11] : memref<32x64xf32, #tpu.memory_space<vmem>>, vector<32x64xf32>
    %cst_12 = arith.constant dense<0.000000e+00> : vector<8x64xf32>
    %11 = tpu.matmul %9, %10, %cst_12 {dimension_numbers = #tpu.dot_dimension_numbers<[1], [0], [0], [1], [0, 0, 1, 1], [], []>} : vector<8x32xf32>, vector<32x64xf32>, vector<8x64xf32> -> vector<8x64xf32>
    %12 = vector.broadcast %1 : vector<1x64xf32> to vector<8x64xf32>
    %13 = arith.addf %11, %12 : vector<8x64xf32>
    %cst_13 = arith.constant 0.000000e+00 : f32
    %14 = vector.broadcast %cst_13 : f32 to vector<8x64xf32>
    %15 = arith.maximumf %13, %14 : vector<8x64xf32>
    %c0_14 = arith.constant 0 : index
    %c0_15 = arith.constant 0 : index
    %16 = vector.load %arg6[%c0_14, %c0_15] : memref<64x128xf32, #tpu.memory_space<vmem>>, vector<64x128xf32>
    %cst_16 = arith.constant dense<0.000000e+00> : vector<8x128xf32>
    %17 = tpu.matmul %15, %16, %cst_16 {dimension_numbers = #tpu.dot_dimension_numbers<[1], [0], [0], [1], [0, 0, 1, 1], [], []>} : vector<8x64xf32>, vector<64x128xf32>, vector<8x128xf32> -> vector<8x128xf32>
    %18 = vector.broadcast %2 : vector<1x128xf32> to vector<8x128xf32>
    %19 = arith.addf %17, %18 : vector<8x128xf32>
    %c0_17 = arith.constant 0 : index
    %c0_18 = arith.constant 0 : index
    %20 = vector.load %arg8[%c0_17, %c0_18] : memref<8x128xf32, #tpu.memory_space<vmem>>, vector<8x128xf32>
    tpu.vector_store %arg8[%c0_17, %c0_18], %19 {strides = array<i32>} : memref<8x128xf32, #tpu.memory_space<vmem>>, vector<8x128xf32>,
    return
  }
  func.func @transform_0(%arg0: i32) -> (i32, i32) {
    %c0_i32 = arith.constant 0 : i32
    %c0_i32_0 = arith.constant 0 : i32
    return %arg0, %c0_i32 : i32, i32
  }
  func.func @transform_1(%arg0: i32) -> (i32, i32) {
    %c0_i32 = arith.constant 0 : i32
    %c0_i32_0 = arith.constant 0 : i32
    %c0_i32_1 = arith.constant 0 : i32
    return %c0_i32, %c0_i32_0 : i32, i32
  }
  func.func @transform_2(%arg0: i32) -> (i32, i32) {
    %c0_i32 = arith.constant 0 : i32
    %c0_i32_0 = arith.constant 0 : i32
    %c0_i32_1 = arith.constant 0 : i32
    return %c0_i32, %c0_i32_0 : i32, i32
  }
  func.func @transform_3(%arg0: i32) -> (i32, i32) {
    %c0_i32 = arith.constant 0 : i32
    %c0_i32_0 = arith.constant 0 : i32
    %c0_i32_1 = arith.constant 0 : i32
    return %c0_i32, %c0_i32_0 : i32, i32
  }
  func.func @transform_4(%arg0: i32) -> (i32, i32) {
    %c0_i32 = arith.constant 0 : i32
    %c0_i32_0 = arith.constant 0 : i32
    %c0_i32_1 = arith.constant 0 : i32
    return %c0_i32, %c0_i32_0 : i32, i32
  }
  func.func @transform_5(%arg0: i32) -> (i32, i32) {
    %c0_i32 = arith.constant 0 : i32
    %c0_i32_0 = arith.constant 0 : i32
    %c0_i32_1 = arith.constant 0 : i32
    return %c0_i32, %c0_i32_0 : i32, i32
  }
  func.func @transform_6(%arg0: i32) -> (i32, i32) {
    %c0_i32 = arith.constant 0 : i32
    %c0_i32_0 = arith.constant 0 : i32
    %c0_i32_1 = arith.constant 0 : i32
    return %c0_i32, %c0_i32_0 : i32, i32
  }
  func.func @transform_7(%arg0: i32) -> (i32, i32) {
    %c0_i32 = arith.constant 0 : i32
    %c0_i32_0 = arith.constant 0 : i32
    return %arg0, %c0_i32 : i32, i32
  }
}

</mosaic_0001>

<llo_original>
// kernel: tpu_custom_call.1
$region0: #{tpu_custom_call.1}
  #allocation0 [shape = 'u32[]', space=smem, size = 0x4, offset = 0x4, fixed_abs, tag = 'smem constant byte address 0x4 - core index']
  #allocation1 [shape = 'u32[144,128]{1,0:T(1,128)}', space=vmem, size = 0x12000, scoped, tag = 'internal scratch']
  %s0 = inlined_call_operand.vmem [shape: f32[8,4], index: 0, kind: input, shape index: {}]
  %s1 = inlined_call_operand.vmem [shape: f32[4,32], index: 1, kind: input, shape index: {}]
  %s2 = inlined_call_operand.vmem [shape: f32[1,32], index: 2, kind: input, shape index: {}]
  %s3 = inlined_call_operand.hbm [shape: f32[32,64], index: 3, kind: input, shape index: {}]
  %s4 = inlined_call_operand.vmem [shape: f32[1,64], index: 4, kind: input, shape index: {}]
  %s5 = inlined_call_operand.hbm [shape: f32[64,128], index: 5, kind: input, shape index: {}]
  %s6 = inlined_call_operand.vmem [shape: f32[1,128], index: 6, kind: input, shape index: {}]
  %s7 = inlined_call_operand.hbm [shape: f32[8,128], index: 7, kind: output, shape index: {}]
  %s8 = sld [smem:[#allocation0]]
  $region46: #{tpu_custom_call.1} parent=0
    _
  %s10 = ssub.s32 1, %s8
  %s11 = scalar_select 0, %s10, %s8
  $region1: #{tpu_custom_call.1} parent=0
    #allocation2 [shape = 'u8[16384]{0}', space=vmem, size = 0x4000, scoped, tag = 'input window, operand 3, single buffered']
    #allocation3 [shape = 's32[1]{0}', space=sflag, size = 0x4, scoped, tag = 'scoped memory for tpu_custom_call.1']
    #allocation4 [shape = 's32[1]{0}', space=sflag, size = 0x4, scoped, tag = 'scoped memory for tpu_custom_call.1']
    #allocation5 [shape = 'u8[32768]{0}', space=vmem, size = 0x8000, scoped, tag = 'input window, operand 5, single buffered']
    #allocation6 [shape = 's32[1]{0}', space=sflag, size = 0x4, scoped, tag = 'scoped memory for tpu_custom_call.1']
    #allocation7 [shape = 'u8[4096]{0}', space=vmem, size = 0x1000, scoped, tag = 'output window, operand 0, single buffered']
    %12 = vsyncpa [#allocation3], 0
    %13 = vsyncpa [#allocation6], 0
    %14 = vsyncpa [#allocation4], 0
    // Predicated region
    $region2: #{tpu_custom_call.1} parent=1 // pred_check
      _
    $region3: #{tpu_custom_call.1} parent=1 // pred_check_branch
      %16 = sbr.rel (0) target = $region5
    $region4: #{tpu_custom_call.1} parent=1 // pred_region
      _
    $region5: #{tpu_custom_call.1} parent=1 // pred_fallthru
      _
    // Predicated region
    $region6: #{tpu_custom_call.1} parent=1 // pred_check
      _
    $region7: #{tpu_custom_call.1} parent=1 // pred_check_branch
      %18 = sbr.rel (0) target = $region9
    $region8: #{tpu_custom_call.1} parent=1 // pred_region
      _
    $region9: #{tpu_custom_call.1} parent=1 // pred_fallthru
      _
    // Predicated region
    $region10: #{tpu_custom_call.1} parent=1 // pred_check
      _
    $region11: #{tpu_custom_call.1} parent=1 // pred_check_branch
      %20 = sbr.rel (0) target = $region13
    $region12: #{tpu_custom_call.1} parent=1 // pred_region
      _
    $region13: #{tpu_custom_call.1} parent=1 // pred_fallthru
      _
    // Predicated region
    $region14: #{tpu_custom_call.1} parent=1 // pred_check
      _
    $region15: #{tpu_custom_call.1} parent=1 // pred_check_branch
      %22 = sbr.rel (0) target = $region17
    $region16: #{tpu_custom_call.1} parent=1 // pred_region
      %s24 = ssub.s32 512, 512
      %25 = vsyncadd [#allocation3], %s24
      %s26 = sshll.u32 [#allocation2], 4
      %s27 = int_to_ptr.vmem [resolvable:$true] %s26
      %32 = dma.hbm_to_vmem [thread:$0]  %s3, 512, %s27, [#allocation3], 128, 128, 8
    $region17: #{tpu_custom_call.1} parent=1 // pred_fallthru
      _
    // Predicated region
    $region18: #{tpu_custom_call.1} parent=1 // pred_check
      _
    $region19: #{tpu_custom_call.1} parent=1 // pred_check_branch
      %34 = sbr.rel (0) target = $region21
    $region20: #{tpu_custom_call.1} parent=1 // pred_region
      _
    $region21: #{tpu_custom_call.1} parent=1 // pred_fallthru
      _
    // Predicated region
    $region22: #{tpu_custom_call.1} parent=1 // pred_check
      _
    $region23: #{tpu_custom_call.1} parent=1 // pred_check_branch
      %36 = sbr.rel (0) target = $region25
    $region24: #{tpu_custom_call.1} parent=1 // pred_region
      %s38 = ssub.s32 1024, 1024
      %39 = vsyncadd [#allocation6], %s38
      %s40 = sshll.u32 [#allocation5], 4
      %s41 = int_to_ptr.vmem [resolvable:$true] %s40
      %46 = dma.hbm_to_vmem [thread:$0]  %s5, 1024, %s41, [#allocation6], 128, 128, 8
    $region25: #{tpu_custom_call.1} parent=1 // pred_fallthru
      _
    // Predicated region
    $region26: #{tpu_custom_call.1} parent=1 // pred_check
      _
    $region27: #{tpu_custom_call.1} parent=1 // pred_check_branch
      %48 = sbr.rel (0) target = $region29
    $region28: #{tpu_custom_call.1} parent=1 // pred_region
      _
    $region29: #{tpu_custom_call.1} parent=1 // pred_fallthru
      _
    // Predicated region
    $region30: #{tpu_custom_call.1} parent=1 // pred_check
      _
    $region31: #{tpu_custom_call.1} parent=1 // pred_check_branch
      %50 = sbr.rel (0) target = $region33
    $region32: #{tpu_custom_call.1} parent=1 // pred_region
      %51 = dma.done [#allocation3], 512
    $region33: #{tpu_custom_call.1} parent=1 // pred_fallthru
      _
    // Predicated region
    $region34: #{tpu_custom_call.1} parent=1 // pred_check
      _
    $region35: #{tpu_custom_call.1} parent=1 // pred_check_branch
      %53 = sbr.rel (0) target = $region37
    $region36: #{tpu_custom_call.1} parent=1 // pred_region
      %54 = dma.done [#allocation6], 1024
    $region37: #{tpu_custom_call.1} parent=1 // pred_fallthru
      _
    %v55 = vld [vmem:[%s2] sm:$0x1]
    %v56 = vld [vmem:[%s4] sm:$0x1]
    %v57 = vld [vmem:[%s6] sm:$0x1]
    %v58 = vld [vmem:[%s0] sm:$0xff]
    %v59 = vld [vmem:[%s1] sm:$0xf]
    %v61 = vlaneseq
    %v62 = vshrl.u32 %v61, 7
    %v63 = vsub.s32 0, %v62
    %v64 = vrot.slane %v55, %v63
    %vm66 = vcmask 31744
    %v68 = vsel %vm66, %v58, 0
    %vm70 = vcmask 1043456
    %v72 = vsel %vm70, %v59, 0
    %74 = vmatprep.subr.mxu0 0.0
    %75 = vmatpush1.msra.mxu0 %v72
    %76 = vmatprep.subr.mxu0 0.0
    %77 = vmatpush1.msra.mxu0 0.0
    %78 = vmatprep.subr.mxu0 0.0
    %79 = vmatpush1.msra.mxu0 0.0
    %80 = vmatprep.subr.mxu0 0.0
    %81 = vmatpush1.msra.mxu0 0.0
    %82 = vmatprep.subr.mxu0 0.0
    %83 = vmatpush1.msra.mxu0 0.0
    %84 = vmatprep.subr.mxu0 0.0
    %85 = vmatpush1.msra.mxu0 0.0
    %86 = vmatprep.subr.mxu0 0.0
    %87 = vmatpush1.msra.mxu0 0.0
    %88 = vmatprep.subr.mxu0 0.0
    %89 = vmatpush1.msra.mxu0 0.0
    %90 = vmatprep.subr.mxu0 0.0
    %91 = vmatpush1.msra.mxu0 0.0
    %92 = vmatprep.subr.mxu0 0.0
    %93 = vmatpush1.msra.mxu0 0.0
    %94 = vmatprep.subr.mxu0 0.0
    %95 = vmatpush1.msra.mxu0 0.0
    %96 = vmatprep.subr.mxu0 0.0
    %97 = vmatpush1.msra.mxu0 0.0
    %98 = vmatprep.subr.mxu0 0.0
    %99 = vmatpush1.msra.mxu0 0.0
    %100 = vmatprep.subr.mxu0 0.0
    %101 = vmatpush1.msra.mxu0 0.0
    %102 = vmatprep.subr.mxu0 0.0
    %103 = vmatpush1.msra.mxu0 0.0
    %104 = vmatprep.subr.mxu0 0.0
    %105 = vmatpush1.msra.mxu0 0.0
    %106 = vmatprep.subr.mxu0 0.0
    %107 = vmatpush1.msra.mxu0 0.0
    %108 = vmatprep.subr.mxu0 0.0
    %109 = vmatpush1.msra.mxu0 0.0
    %110 = vmatprep.subr.mxu0 0.0
    %111 = vmatpush1.msra.mxu0 0.0
    %112 = vmatprep.subr.mxu0 0.0
    %113 = vmatpush1.msra.mxu0 0.0
    %114 = vmatprep.subr.mxu0 0.0
    %115 = vmatpush1.msra.mxu0 0.0
    %116 = vmatprep.subr.mxu0 0.0
    %117 = vmatpush1.msra.mxu0 0.0
    %118 = vmatprep.subr.mxu0 0.0
    %119 = vmatpush1.msra.mxu0 0.0
    %120 = vmatprep.subr.mxu0 0.0
    %121 = vmatpush1.msra.mxu0 0.0
    %122 = vmatprep.subr.mxu0 0.0
    %123 = vmatpush1.msra.mxu0 0.0
    %124 = vmatprep.subr.mxu0 0.0
    %125 = vmatpush1.msra.mxu0 0.0
    %126 = vmatprep.subr.mxu0 0.0
    %127 = vmatpush1.msra.mxu0 0.0
    %128 = vmatprep.subr.mxu0 0.0
    %129 = vmatpush1.msra.mxu0 0.0
    %130 = vmatprep.subr.mxu0 0.0
    %131 = vmatpush1.msra.mxu0 0.0
    %132 = vmatprep.subr.mxu0 0.0
    %133 = vmatpush1.msra.mxu0 0.0
    %134 = vmatprep.subr.mxu0 0.0
    %135 = vmatpush1.msra.mxu0 0.0
    %136 = vmatprep.subr.mxu0 0.0
    %137 = vmatpush1.msra.mxu0 0.0
    %138 = vmatprep.mubr.f32.mxu0 0.0
    %139 = vmatmul.mubr.f32.gmra.mrb[0].mxu0 %v68
    %v140 = vpop.f32.mrb[0].mxu0
    %v141 = vadd.f32 %v64, %v140
    %v142 = vpop.f32.mrb[0].mxu0
    %143 = vdwg.mxu0
    %v144 = vmax.f32 %v141, 0.0
    %v145 = vld [vmem:[#allocation2] sm:$0xff]
    %v146 = vld [vmem:[#allocation2 + $0x8] sm:$0xff]
    %v147 = vld [vmem:[#allocation2 + $0x10] sm:$0xff]
    %v148 = vld [vmem:[#allocation2 + $0x18] sm:$0xff]
    %v150 = vlaneseq
    %v151 = vshrl.u32 %v150, 7
    %v152 = vsub.s32 0, %v151
    %v153 = vrot.slane %v56, %v152
    %vm155 = vcmask 261120
    %v157 = vsel %vm155, %v144, 0
    %159 = vmatprep.subr.mxu0 0.0
    %160 = vmatpush1.msra.mxu0 %v145
    %161 = vmatprep.subr.mxu0 0.0
    %162 = vmatpush1.msra.mxu0 %v146
    %163 = vmatprep.subr.mxu0 0.0
    %164 = vmatpush1.msra.mxu0 %v147
    %165 = vmatprep.subr.mxu0 0.0
    %166 = vmatpush1.msra.mxu0 %v148
    %167 = vmatprep.subr.mxu0 0.0
    %168 = vmatpush1.msra.mxu0 0.0
    %169 = vmatprep.subr.mxu0 0.0
    %170 = vmatpush1.msra.mxu0 0.0
    %171 = vmatprep.subr.mxu0 0.0
    %172 = vmatpush1.msra.mxu0 0.0
    %173 = vmatprep.subr.mxu0 0.0
    %174 = vmatpush1.msra.mxu0 0.0
    %175 = vmatprep.subr.mxu0 0.0
    %176 = vmatpush1.msra.mxu0 0.0
    %177 = vmatprep.subr.mxu0 0.0
    %178 = vmatpush1.msra.mxu0 0.0
    %179 = vmatprep.subr.mxu0 0.0
    %180 = vmatpush1.msra.mxu0 0.0
    %181 = vmatprep.subr.mxu0 0.0
    %182 = vmatpush1.msra.mxu0 0.0
    %183 = vmatprep.subr.mxu0 0.0
    %184 = vmatpush1.msra.mxu0 0.0
    %185 = vmatprep.subr.mxu0 0.0
    %186 = vmatpush1.msra.mxu0 0.0
    %187 = vmatprep.subr.mxu0 0.0
    %188 = vmatpush1.msra.mxu0 0.0
    %189 = vmatprep.subr.mxu0 0.0
    %190 = vmatpush1.msra.mxu0 0.0
    %191 = vmatprep.subr.mxu0 0.0
    %192 = vmatpush1.msra.mxu0 0.0
    %193 = vmatprep.subr.mxu0 0.0
    %194 = vmatpush1.msra.mxu0 0.0
    %195 = vmatprep.subr.mxu0 0.0
    %196 = vmatpush1.msra.mxu0 0.0
    %197 = vmatprep.subr.mxu0 0.0
    %198 = vmatpush1.msra.mxu0 0.0
    %199 = vmatprep.subr.mxu0 0.0
    %200 = vmatpush1.msra.mxu0 0.0
    %201 = vmatprep.subr.mxu0 0.0
    %202 = vmatpush1.msra.mxu0 0.0
    %203 = vmatprep.subr.mxu0 0.0
    %204 = vmatpush1.msra.mxu0 0.0
    %205 = vmatprep.subr.mxu0 0.0
    %206 = vmatpush1.msra.mxu0 0.0
    %207 = vmatprep.subr.mxu0 0.0
    %208 = vmatpush1.msra.mxu0 0.0
    %209 = vmatprep.subr.mxu0 0.0
    %210 = vmatpush1.msra.mxu0 0.0
    %211 = vmatprep.subr.mxu0 0.0
    %212 = vmatpush1.msra.mxu0 0.0
    %213 = vmatprep.subr.mxu0 0.0
    %214 = vmatpush1.msra.mxu0 0.0
    %215 = vmatprep.subr.mxu0 0.0
    %216 = vmatpush1.msra.mxu0 0.0
    %217 = vmatprep.subr.mxu0 0.0
    %218 = vmatpush1.msra.mxu0 0.0
    %219 = vmatprep.subr.mxu0 0.0
    %220 = vmatpush1.msra.mxu0 0.0
    %221 = vmatprep.subr.mxu0 0.0
    %222 = vmatpush1.msra.mxu0 0.0
    %223 = vmatprep.mubr.f32.mxu0 0.0
    %224 = vmatmul.mubr.f32.gmra.mrb[0].mxu0 %v157
    %v225 = vpop.f32.mrb[0].mxu0
    %v226 = vadd.f32 %v153, %v225
    %v227 = vpop.f32.mrb[0].mxu0
    %228 = vdwg.mxu0
    %v229 = vmax.f32 %v226, 0.0
    %v230 = vld [vmem:[#allocation5] sm:$0xff]
    %v231 = vld [vmem:[#allocation5 + $0x8] sm:$0xff]
    %v232 = vld [vmem:[#allocation5 + $0x10] sm:$0xff]
    %v233 = vld [vmem:[#allocation5 + $0x18] sm:$0xff]
    %v234 = vld [vmem:[#allocation5 + $0x20] sm:$0xff]
    %v235 = vld [vmem:[#allocation5 + $0x28] sm:$0xff]
    %v236 = vld [vmem:[#allocation5 + $0x30] sm:$0xff]
    %v237 = vld [vmem:[#allocation5 + $0x38] sm:$0xff]
    %v239 = vlaneseq
    %v240 = vshrl.u32 %v239, 7
    %v241 = vsub.s32 0, %v240
    %v242 = vrot.slane %v57, %v241
    %vm244 = vcmask 523264
    %v246 = vsel %vm244, %v229, 0
    %248 = vmatprep.subr.mxu0 0.0
    %249 = vmatpush1.msra.mxu0 %v230
    %250 = vmatprep.subr.mxu0 0.0
    %251 = vmatpush1.msra.mxu0 %v231
    %252 = vmatprep.subr.mxu0 0.0
    %253 = vmatpush1.msra.mxu0 %v232
    %254 = vmatprep.subr.mxu0 0.0
    %255 = vmatpush1.msra.mxu0 %v233
    %256 = vmatprep.subr.mxu0 0.0
    %257 = vmatpush1.msra.mxu0 %v234
    %258 = vmatprep.subr.mxu0 0.0
    %259 = vmatpush1.msra.mxu0 %v235
    %260 = vmatprep.subr.mxu0 0.0
    %261 = vmatpush1.msra.mxu0 %v236
    %262 = vmatprep.subr.mxu0 0.0
    %263 = vmatpush1.msra.mxu0 %v237
    %264 = vmatprep.subr.mxu0 0.0
    %265 = vmatpush1.msra.mxu0 0.0
    %266 = vmatprep.subr.mxu0 0.0
    %267 = vmatpush1.msra.mxu0 0.0
    %268 = vmatprep.subr.mxu0 0.0
    %269 = vmatpush1.msra.mxu0 0.0
    %270 = vmatprep.subr.mxu0 0.0
    %271 = vmatpush1.msra.mxu0 0.0
    %272 = vmatprep.subr.mxu0 0.0
    %273 = vmatpush1.msra.mxu0 0.0
    %274 = vmatprep.subr.mxu0 0.0
    %275 = vmatpush1.msra.mxu0 0.0
    %276 = vmatprep.subr.mxu0 0.0
    %277 = vmatpush1.msra.mxu0 0.0
    %278 = vmatprep.subr.mxu0 0.0
    %279 = vmatpush1.msra.mxu0 0.0
    %280 = vmatprep.subr.mxu0 0.0
    %281 = vmatpush1.msra.mxu0 0.0
    %282 = vmatprep.subr.mxu0 0.0
    %283 = vmatpush1.msra.mxu0 0.0
    %284 = vmatprep.subr.mxu0 0.0
    %285 = vmatpush1.msra.mxu0 0.0
    %286 = vmatprep.subr.mxu0 0.0
    %287 = vmatpush1.msra.mxu0 0.0
    %288 = vmatprep.subr.mxu0 0.0
    %289 = vmatpush1.msra.mxu0 0.0
    %290 = vmatprep.subr.mxu0 0.0
    %291 = vmatpush1.msra.mxu0 0.0
    %292 = vmatprep.subr.mxu0 0.0
    %293 = vmatpush1.msra.mxu0 0.0
    %294 = vmatprep.subr.mxu0 0.0
    %295 = vmatpush1.msra.mxu0 0.0
    %296 = vmatprep.subr.mxu0 0.0
    %297 = vmatpush1.msra.mxu0 0.0
    %298 = vmatprep.subr.mxu0 0.0
    %299 = vmatpush1.msra.mxu0 0.0
    %300 = vmatprep.subr.mxu0 0.0
    %301 = vmatpush1.msra.mxu0 0.0
    %302 = vmatprep.subr.mxu0 0.0
    %303 = vmatpush1.msra.mxu0 0.0
    %304 = vmatprep.subr.mxu0 0.0
    %305 = vmatpush1.msra.mxu0 0.0
    %306 = vmatprep.subr.mxu0 0.0
    %307 = vmatpush1.msra.mxu0 0.0
    %308 = vmatprep.subr.mxu0 0.0
    %309 = vmatpush1.msra.mxu0 0.0
    %310 = vmatprep.subr.mxu0 0.0
    %311 = vmatpush1.msra.mxu0 0.0
    %312 = vmatprep.mubr.f32.mxu0 0.0
    %313 = vmatmul.mubr.f32.gmra.mrb[0].mxu0 %v246
    %v314 = vpop.f32.mrb[0].mxu0
    %v315 = vadd.f32 %v242, %v314
    %v316 = vpop.f32.mrb[0].mxu0
    %317 = vdwg.mxu0
    %318 = vst [vmem:[#allocation7] sm:$0xff] %v315
    // Predicated region
    $region38: #{tpu_custom_call.1} parent=1 // pred_check
      _
    $region39: #{tpu_custom_call.1} parent=1 // pred_check_branch
      %320 = sbr.rel (0) target = $region41
    $region40: #{tpu_custom_call.1} parent=1 // pred_region
      %s322 = ssub.s32 128, 128
      %323 = vsyncadd [#allocation4], %s322
      %s325 = sshll.u32 [#allocation7], 4
      %s326 = int_to_ptr.vmem [resolvable:$true] %s325
      %328 = dma.vmem_to_hbm [thread:$0]  %s326, 128, %s7, [#allocation4]
    $region41: #{tpu_custom_call.1} parent=1 // pred_fallthru
      _
    // Predicated region
    $region42: #{tpu_custom_call.1} parent=1 // pred_check
      _
    $region43: #{tpu_custom_call.1} parent=1 // pred_check_branch
      %330 = sbr.rel (0) target = $region45
    $region44: #{tpu_custom_call.1} parent=1 // pred_region
      %331 = dma.done [#allocation4], 128
    $region45: #{tpu_custom_call.1} parent=1 // pred_fallthru
      _
    %332 = vsyncpa [#allocation3], 1
    %333 = vsyncpa [#allocation6], 1
    %334 = vsyncpa [#allocation4], 1

</llo_original>
